<compile_context>
chip_gen: v5e
topology: v5e:2x2
jax: 0.10.0
libtpu: 0.0.40
codegen_flags: <defaults>
</compile_context>

<pallas_src>
import jax
import jax.numpy as jnp
from jax.experimental import pallas as pl
from jax.experimental.pallas import tpu as pltpu

LN_EPS = 1e-5   # nn.LayerNorm default
SUB = 16        # sublane multiple for bf16-packed batch tiles


def _layernorm_relu(h, gamma, beta, h_dim):
    """Two-pass LayerNorm (matches PyTorch's biased variance) + ReLU."""
    inv_h = 1.0 / h_dim
    mean = jnp.sum(h, axis=-1, keepdims=True) * inv_h
    d = h - mean
    var = jnp.sum(d * d, axis=-1, keepdims=True) * inv_h
    h = d * jax.lax.rsqrt(var + LN_EPS)
    return jnp.maximum(h * gamma + beta, 0.0)


def critic_kernel(x_ref, w1_ref, w2_ref, p_ref, out_ref):
    H = w1_ref.shape[1]

    # Packed parameter block (8, H), read once per grid step:
    #   row 0: b1   row 1: g1   row 2: be1
    #   row 3: b2   row 4: g2   row 5: be2
    #   row 6: w3 (head row)    row 7, col 0: b3 (head bias)
    p = p_ref[...]
    b1, g1, be1 = p[0:1, :], p[1:2, :], p[2:3, :]
    b2, g2, be2 = p[3:4, :], p[4:5, :], p[5:6, :]
    w3 = p[6:7, :]
    b3 = p[7:8, 0:1]

    # Layer 1: Linear (bf16 MXU, f32 accumulate) -> Dropout(id) -> LN -> ReLU
    h = jnp.dot(x_ref[...], w1_ref[...],
                preferred_element_type=jnp.float32) + b1
    h = _layernorm_relu(h, g1, be1, H)

    # Layer 2: Linear -> Dropout(id) -> LN -> ReLU
    h = jnp.dot(h.astype(jnp.bfloat16), w2_ref[...],
                preferred_element_type=jnp.float32) + b2
    h = _layernorm_relu(h, g2, be2, H)

    # Output head Linear(H, 1): VPU multiply + XLU lane reduction (a 1-column
    # MXU matmul would waste a full systolic pass).
    q = jnp.sum(h * w3, axis=-1, keepdims=True) + b3          # (tb, 1)

    # Lane-dense store: transpose the Q column to a row (XLU is idle here) so
    # the writeback is full vst + one contiguous DMA instead of masked stores.
    out_ref[...] = jnp.transpose(q)[None].astype(out_ref.dtype)  # (1, 1, tb)


def _round_up(x, m):
    return ((x + m - 1) // m) * m


def critic_forward(obs_action, params, *, block_batch=2048):
    """obs_action: [B, obs_dim + action_dim] float32 -> [B, 1] float32."""
    B, in_dim = obs_action.shape
    w1, w2, pblk = params
    H = w1.shape[1]

    # Cast the activation stream to bf16 in the wrapper: the matmul truncates
    # to bf16 anyway, so this halves the dominant HBM read for free.
    x = obs_action.astype(jnp.bfloat16)

    # --- batch tile selection -------------------------------------------
    b_pad = _round_up(B, SUB)
    tb = min(block_batch, b_pad)
    if b_pad > 256:
        # Guarantee >= 2 grid tiles so v7x's second TensorCore is not idle.
        tb = min(tb, _round_up(pl.cdiv(b_pad, 2), SUB))

    # VMEM guard sized for v7x (64 MiB physical / 32 MiB scoped default).
    def _tile_bytes(t):
        return (2 * t * in_dim * 2      # double-buffered bf16 input tile
                + 2 * t * 4             # double-buffered f32 output row
                + 2 * t * H * 4)        # live f32 hidden activations
    VMEM_BUDGET = 20 * 1024 * 1024
    while tb > SUB and _tile_bytes(tb) > VMEM_BUDGET:
        tb = _round_up(tb // 2, SUB)

    b_pad = _round_up(b_pad, tb)
    if b_pad != B:
        x = jnp.pad(x, ((0, b_pad - B), (0, 0)))
    n_tiles = b_pad // tb

    # --- specs -----------------------------------------------------------
    # Activations / output tiled over batch; every parameter has a constant
    # index_map so it is DMA'd once and stays VMEM-resident across all steps.
    x_spec = pl.BlockSpec((tb, in_dim), lambda i: (i, 0))
    out_spec = pl.BlockSpec((1, 1, tb), lambda i: (i, 0, 0))
    const = lambda a: pl.BlockSpec(a.shape, lambda i: (0,) * a.ndim)

    cost = pl.CostEstimate(
        flops=2 * b_pad * (in_dim * H + H * H + H),
        transcendentals=2 * b_pad,                      # rsqrt per LN per row
        bytes_accessed=(b_pad * in_dim * 2 + b_pad * 4
                        + w1.size * 2 + w2.size * 2 + pblk.size * 4),
    )

    out = pl.pallas_call(
        critic_kernel,
        out_shape=jax.ShapeDtypeStruct((n_tiles, 1, tb), jnp.float32),
        grid_spec=pltpu.PrefetchScalarGridSpec(
            num_scalar_prefetch=0,
            grid=(n_tiles,),
            in_specs=[x_spec, const(w1), const(w2), const(pblk)],
            out_specs=out_spec,
        ),
        compiler_params=pltpu.CompilerParams(
            dimension_semantics=("parallel",),   # megacore split on v7x
        ),
        cost_estimate=cost,
    )(x, w1, w2, pblk)

    return out.reshape(b_pad, 1)[:B]


def critic_reference(obs_action, params):
    """Pure-JAX reference (same bf16 matmul precision) for correctness check."""
    w1, w2, p = params
    b1, g1, be1 = p[0:1], p[1:2], p[2:3]
    b2, g2, be2 = p[3:4], p[4:5], p[5:6]
    w3, b3 = p[6:7], p[7:8, 0:1]

    def ln_relu(h, g, be):
        m = jnp.mean(h, axis=-1, keepdims=True)
        v = jnp.mean((h - m) ** 2, axis=-1, keepdims=True)
        return jnp.maximum((h - m) * jax.lax.rsqrt(v + LN_EPS) * g + be, 0.0)

    h = jnp.dot(obs_action.astype(jnp.bfloat16), w1,
                preferred_element_type=jnp.float32) + b1
    h = ln_relu(h, g1, be1)
    h = jnp.dot(h.astype(jnp.bfloat16), w2,
                preferred_element_type=jnp.float32) + b2
    h = ln_relu(h, g2, be2)
    return jnp.sum(h * w3, axis=-1, keepdims=True) + b3


def _orthogonal(key, rows, cols):
    """Deterministic orthogonal init (QR of a Gaussian), like nn.init.orthogonal_."""
    n = max(rows, cols)
    a = jax.random.normal(key, (n, n), dtype=jnp.float32)
    q, r = jnp.linalg.qr(a)
    q = q * jnp.sign(jnp.diag(r))
    return q[:rows, :cols]


def make_params(key, in_dim, hidden_dim):
    k1, k2, k3 = jax.random.split(key, 3)
    # PyTorch Linear weight is [out, in]; store transposed [in, out].
    # Hidden-layer weights kept in bf16 (MXU-native, half the VMEM/DMA bytes);
    # biases / LayerNorm params / head stay f32 in one packed (8, H) block.
    # (PyTorch stores f32 weights; the MXU matmul truncates to bf16 either way.)
    w1 = _orthogonal(k1, hidden_dim, in_dim).T.astype(jnp.bfloat16)     # [in, H]
    w2 = _orthogonal(k2, hidden_dim, hidden_dim).T.astype(jnp.bfloat16)  # [H, H]
    w3 = _orthogonal(k3, 1, hidden_dim).astype(jnp.float32)              # [1, H]

    pblk = jnp.zeros((8, hidden_dim), jnp.float32)
    pblk = pblk.at[1].set(1.0)        # g1 (LayerNorm weight init)
    pblk = pblk.at[4].set(1.0)        # g2
    pblk = pblk.at[6].set(w3[0])      # head row
    # rows 0,2,3,5 (biases) and row 7 col 0 (head bias) are zero at init.

    return (w1, w2, pblk)


if __name__ == "__main__":
    # Small shapes: obs_dim=24, action_dim=8, hidden_dim=32, hidden_depth=2, batch=8
    obs_dim, action_dim, hidden_dim, batch = 24, 8, 32, 8
    in_dim = obs_dim + action_dim

    key = jax.random.PRNGKey(0)
    k_x, k_p = jax.random.split(key)
    obs_action = jax.random.normal(k_x, (batch, in_dim), dtype=jnp.float32)
    params = make_params(k_p, in_dim, hidden_dim)

    q = critic_forward(obs_action, params)
    q = jax.block_until_ready(q)
    assert q.shape == (batch, 1) and q.dtype == jnp.float32

    q_ref = jax.block_until_ready(critic_reference(obs_action, params))
    assert jnp.allclose(q, q_ref, atol=1e-2, rtol=1e-2)

    print("KERNEL_OK")
</pallas_src>

<mosaic_0001>
module attributes {stable_mosaic.version = 11 : i64} {
  func.func @critic_kernel(%arg0: i32, %arg1: memref<16x32xbf16, #tpu.memory_space<vmem>>, %arg2: memref<32x32xbf16, #tpu.memory_space<vmem>>, %arg3: memref<32x32xbf16, #tpu.memory_space<vmem>>, %arg4: memref<8x32xf32, #tpu.memory_space<vmem>>, %arg5: memref<1x1x16xf32, #tpu.memory_space<vmem>>) attributes {dimension_semantics = [#tpu.dimension_semantics<parallel>], iteration_bounds = array<i64: 1>, scalar_prefetch = 0 : i64, scratch_operands = 0 : i64, tpu.core_type = #tpu.core_type<tc>, window_params = [{transform_indices = @transform_0, window_bounds = array<i64: 16, 32>}, {pipeline_mode = #tpu.pipeline_mode<synchronous>, transform_indices = @transform_1, window_bounds = array<i64: 32, 32>}, {pipeline_mode = #tpu.pipeline_mode<synchronous>, transform_indices = @transform_2, window_bounds = array<i64: 32, 32>}, {pipeline_mode = #tpu.pipeline_mode<synchronous>, transform_indices = @transform_3, window_bounds = array<i64: 8, 32>}, {transform_indices = @transform_4, window_bounds = array<i64: 1, 1, 16>}]} {
    %c0 = arith.constant 0 : index
    %c0_0 = arith.constant 0 : index
    %0 = vector.load %arg4[%c0, %c0_0] : memref<8x32xf32, #tpu.memory_space<vmem>>, vector<8x32xf32>
    %1 = vector.extract_strided_slice %0 {offsets = [0, 0], sizes = [1, 32], strides = [1, 1]} : vector<8x32xf32> to vector<1x32xf32>
    %2 = vector.extract_strided_slice %0 {offsets = [1, 0], sizes = [1, 32], strides = [1, 1]} : vector<8x32xf32> to vector<1x32xf32>
    %3 = vector.extract_strided_slice %0 {offsets = [2, 0], sizes = [1, 32], strides = [1, 1]} : vector<8x32xf32> to vector<1x32xf32>
    %4 = vector.extract_strided_slice %0 {offsets = [3, 0], sizes = [1, 32], strides = [1, 1]} : vector<8x32xf32> to vector<1x32xf32>
    %5 = vector.extract_strided_slice %0 {offsets = [4, 0], sizes = [1, 32], strides = [1, 1]} : vector<8x32xf32> to vector<1x32xf32>
    %6 = vector.extract_strided_slice %0 {offsets = [5, 0], sizes = [1, 32], strides = [1, 1]} : vector<8x32xf32> to vector<1x32xf32>
    %7 = vector.extract_strided_slice %0 {offsets = [6, 0], sizes = [1, 32], strides = [1, 1]} : vector<8x32xf32> to vector<1x32xf32>
    %8 = vector.extract_strided_slice %0 {offsets = [7, 0], sizes = [1, 1], strides = [1, 1]} : vector<8x32xf32> to vector<1x1xf32>
    %c0_1 = arith.constant 0 : index
    %c0_2 = arith.constant 0 : index
    %9 = vector.load %arg1[%c0_1, %c0_2] : memref<16x32xbf16, #tpu.memory_space<vmem>>, vector<16x32xbf16>
    %c0_3 = arith.constant 0 : index
    %c0_4 = arith.constant 0 : index
    %10 = vector.load %arg2[%c0_3, %c0_4] : memref<32x32xbf16, #tpu.memory_space<vmem>>, vector<32x32xbf16>
    %cst = arith.constant dense<0.000000e+00> : vector<16x32xf32>
    %11 = tpu.matmul %9, %10, %cst {dimension_numbers = #tpu.dot_dimension_numbers<[1], [0], [0], [1], [0, 0, 1, 1], [], []>} : vector<16x32xbf16>, vector<32x32xbf16>, vector<16x32xf32> -> vector<16x32xf32>
    %12 = vector.broadcast %1 : vector<1x32xf32> to vector<16x32xf32>
    %13 = arith.addf %11, %12 : vector<16x32xf32>
    %cst_5 = arith.constant dense<0.000000e+00> : vector<16xf32>
    %14 = vector.multi_reduction <add>, %13, %cst_5 [1] : vector<16x32xf32> to vector<16xf32>
    %15 = vector.shape_cast %14 : vector<16xf32> to vector<16x1xf32>
    %cst_6 = arith.constant 3.125000e-02 : f32
    %16 = vector.broadcast %cst_6 : f32 to vector<16x1xf32>
    %17 = arith.mulf %15, %16 : vector<16x1xf32>
    %18 = vector.broadcast %17 : vector<16x1xf32> to vector<16x32xf32>
    %19 = arith.subf %13, %18 : vector<16x32xf32>
    %20 = arith.mulf %19, %19 : vector<16x32xf32>
    %cst_7 = arith.constant dense<0.000000e+00> : vector<16xf32>
    %21 = vector.multi_reduction <add>, %20, %cst_7 [1] : vector<16x32xf32> to vector<16xf32>
    %22 = vector.shape_cast %21 : vector<16xf32> to vector<16x1xf32>
    %cst_8 = arith.constant 3.125000e-02 : f32
    %23 = vector.broadcast %cst_8 : f32 to vector<16x1xf32>
    %24 = arith.mulf %22, %23 : vector<16x1xf32>
    %cst_9 = arith.constant 9.99999974E-6 : f32
    %25 = vector.broadcast %cst_9 : f32 to vector<16x1xf32>
    %26 = arith.addf %24, %25 : vector<16x1xf32>
    %27 = math.rsqrt %26 : vector<16x1xf32>
    %28 = vector.broadcast %27 : vector<16x1xf32> to vector<16x32xf32>
    %29 = arith.mulf %19, %28 : vector<16x32xf32>
    %30 = vector.broadcast %2 : vector<1x32xf32> to vector<16x32xf32>
    %31 = arith.mulf %29, %30 : vector<16x32xf32>
    %32 = vector.broadcast %3 : vector<1x32xf32> to vector<16x32xf32>
    %33 = arith.addf %31, %32 : vector<16x32xf32>
    %cst_10 = arith.constant 0.000000e+00 : f32
    %34 = vector.broadcast %cst_10 : f32 to vector<16x32xf32>
    %35 = arith.maximumf %33, %34 : vector<16x32xf32>
    %36 = arith.truncf %35 : vector<16x32xf32> to vector<16x32xbf16>
    %c0_11 = arith.constant 0 : index
    %c0_12 = arith.constant 0 : index
    %37 = vector.load %arg3[%c0_11, %c0_12] : memref<32x32xbf16, #tpu.memory_space<vmem>>, vector<32x32xbf16>
    %cst_13 = arith.constant dense<0.000000e+00> : vector<16x32xf32>
    %38 = tpu.matmul %36, %37, %cst_13 {dimension_numbers = #tpu.dot_dimension_numbers<[1], [0], [0], [1], [0, 0, 1, 1], [], []>} : vector<16x32xbf16>, vector<32x32xbf16>, vector<16x32xf32> -> vector<16x32xf32>
    %39 = vector.broadcast %4 : vector<1x32xf32> to vector<16x32xf32>
    %40 = arith.addf %38, %39 : vector<16x32xf32>
    %cst_14 = arith.constant dense<0.000000e+00> : vector<16xf32>
    %41 = vector.multi_reduction <add>, %40, %cst_14 [1] : vector<16x32xf32> to vector<16xf32>
    %42 = vector.shape_cast %41 : vector<16xf32> to vector<16x1xf32>
    %cst_15 = arith.constant 3.125000e-02 : f32
    %43 = vector.broadcast %cst_15 : f32 to vector<16x1xf32>
    %44 = arith.mulf %42, %43 : vector<16x1xf32>
    %45 = vector.broadcast %44 : vector<16x1xf32> to vector<16x32xf32>
    %46 = arith.subf %40, %45 : vector<16x32xf32>
    %47 = arith.mulf %46, %46 : vector<16x32xf32>
    %cst_16 = arith.constant dense<0.000000e+00> : vector<16xf32>
    %48 = vector.multi_reduction <add>, %47, %cst_16 [1] : vector<16x32xf32> to vector<16xf32>
    %49 = vector.shape_cast %48 : vector<16xf32> to vector<16x1xf32>
    %cst_17 = arith.constant 3.125000e-02 : f32
    %50 = vector.broadcast %cst_17 : f32 to vector<16x1xf32>
    %51 = arith.mulf %49, %50 : vector<16x1xf32>
    %cst_18 = arith.constant 9.99999974E-6 : f32
    %52 = vector.broadcast %cst_18 : f32 to vector<16x1xf32>
    %53 = arith.addf %51, %52 : vector<16x1xf32>
    %54 = math.rsqrt %53 : vector<16x1xf32>
    %55 = vector.broadcast %54 : vector<16x1xf32> to vector<16x32xf32>
    %56 = arith.mulf %46, %55 : vector<16x32xf32>
    %57 = vector.broadcast %5 : vector<1x32xf32> to vector<16x32xf32>
    %58 = arith.mulf %56, %57 : vector<16x32xf32>
    %59 = vector.broadcast %6 : vector<1x32xf32> to vector<16x32xf32>
    %60 = arith.addf %58, %59 : vector<16x32xf32>
    %cst_19 = arith.constant 0.000000e+00 : f32
    %61 = vector.broadcast %cst_19 : f32 to vector<16x32xf32>
    %62 = arith.maximumf %60, %61 : vector<16x32xf32>
    %63 = vector.broadcast %7 : vector<1x32xf32> to vector<16x32xf32>
    %64 = arith.mulf %62, %63 : vector<16x32xf32>
    %cst_20 = arith.constant dense<0.000000e+00> : vector<16xf32>
    %65 = vector.multi_reduction <add>, %64, %cst_20 [1] : vector<16x32xf32> to vector<16xf32>
    %66 = vector.shape_cast %65 : vector<16xf32> to vector<16x1xf32>
    %67 = vector.broadcast %8 : vector<1x1xf32> to vector<16x1xf32>
    %68 = arith.addf %66, %67 : vector<16x1xf32>
    %69 = tpu.transpose %68, [1, 0] : vector<16x1xf32> -> vector<1x16xf32>
    %70 = vector.shape_cast %69 : vector<1x16xf32> to vector<1x1x16xf32>
    %c0_21 = arith.constant 0 : index
    %c0_22 = arith.constant 0 : index
    %c0_23 = arith.constant 0 : index
    %71 = vector.load %arg5[%c0_21, %c0_22, %c0_23] : memref<1x1x16xf32, #tpu.memory_space<vmem>>, vector<1x1x16xf32>
    tpu.vector_store %arg5[%c0_21, %c0_22, %c0_23], %70 {strides = array<i32>} : memref<1x1x16xf32, #tpu.memory_space<vmem>>, vector<1x1x16xf32>,
    return
  }
  func.func @transform_0(%arg0: i32) -> (i32, i32) {
    %c0_i32 = arith.constant 0 : i32
    %c0_i32_0 = arith.constant 0 : i32
    return %arg0, %c0_i32 : i32, i32
  }
  func.func @transform_1(%arg0: i32) -> (i32, i32) {
    %c0_i32 = arith.constant 0 : i32
    %c0_i32_0 = arith.constant 0 : i32
    %c0_i32_1 = arith.constant 0 : i32
    return %c0_i32, %c0_i32_0 : i32, i32
  }
  func.func @transform_2(%arg0: i32) -> (i32, i32) {
    %c0_i32 = arith.constant 0 : i32
    %c0_i32_0 = arith.constant 0 : i32
    %c0_i32_1 = arith.constant 0 : i32
    return %c0_i32, %c0_i32_0 : i32, i32
  }
  func.func @transform_3(%arg0: i32) -> (i32, i32) {
    %c0_i32 = arith.constant 0 : i32
    %c0_i32_0 = arith.constant 0 : i32
    %c0_i32_1 = arith.constant 0 : i32
    return %c0_i32, %c0_i32_0 : i32, i32
  }
  func.func @transform_4(%arg0: i32) -> (i32, i32, i32) {
    %c0_i32 = arith.constant 0 : i32
    %c0_i32_0 = arith.constant 0 : i32
    %c0_i32_1 = arith.constant 0 : i32
    return %arg0, %c0_i32, %c0_i32_0 : i32, i32, i32
  }
}

</mosaic_0001>

<llo_original>
// kernel: tpu_custom_call.1
$region0: #{tpu_custom_call.1}
  #allocation0 [shape = 'u32[]', space=smem, size = 0x4, offset = 0x4, fixed_abs, tag = 'smem constant byte address 0x4 - core index']
  #allocation1 [shape = 'u32[72,128]{1,0:T(1,128)}', space=vmem, size = 0x9000, scoped, tag = 'internal scratch']
  %s0 = inlined_call_operand.hbm [shape: bf16[16,32], index: 0, kind: input, shape index: {}]
  %s1 = inlined_call_operand.hbm [shape: bf16[32,32], index: 1, kind: input, shape index: {}]
  %s2 = inlined_call_operand.hbm [shape: bf16[32,32], index: 2, kind: input, shape index: {}]
  %s3 = inlined_call_operand.hbm [shape: f32[8,32], index: 3, kind: input, shape index: {}]
  %s4 = inlined_call_operand.hbm [shape: f32[1,1,16], index: 4, kind: output, shape index: {}]
  %s5 = sld [smem:[#allocation0]]
  $region42: #{tpu_custom_call.1} parent=0
    _
  %s7 = ssub.s32 1, %s5
  %s8 = scalar_select 0, %s7, %s5
  $region1: #{tpu_custom_call.1} parent=0
    #allocation2 [shape = 'u8[4096]{0}', space=vmem, size = 0x1000, scoped, tag = 'input window, operand 0, single buffered']
    #allocation3 [shape = 's32[1]{0}', space=sflag, size = 0x4, scoped, tag = 'scoped memory for tpu_custom_call.1']
    #allocation4 [shape = 's32[1]{0}', space=sflag, size = 0x4, scoped, tag = 'scoped memory for tpu_custom_call.1']
    #allocation5 [shape = 'u8[8192]{0}', space=vmem, size = 0x2000, scoped, tag = 'input window, operand 1, single buffered']
    #allocation6 [shape = 's32[1]{0}', space=sflag, size = 0x4, scoped, tag = 'scoped memory for tpu_custom_call.1']
    #allocation7 [shape = 'u8[8192]{0}', space=vmem, size = 0x2000, scoped, tag = 'input window, operand 2, single buffered']
    #allocation8 [shape = 'u8[4096]{0}', space=vmem, size = 0x1000, scoped, tag = 'input window, operand 3, single buffered']
    #allocation9 [shape = 's32[1]{0}', space=sflag, size = 0x4, scoped, tag = 'scoped memory for tpu_custom_call.1']
    #allocation10 [shape = 'u8[512]{0}', space=vmem, size = 0x400, scoped, tag = 'output window, operand 0, single buffered']
    %9 = vsyncpa [#allocation3], 0
    %10 = vsyncpa [#allocation6], 0
    %11 = vsyncpa [#allocation9], 0
    %12 = vsyncpa [#allocation4], 0
    // Predicated region
    $region2: #{tpu_custom_call.1} parent=1 // pred_check
      _
    $region3: #{tpu_custom_call.1} parent=1 // pred_check_branch
      %14 = sbr.rel (0) target = $region5
    $region4: #{tpu_custom_call.1} parent=1 // pred_region
      %16 = vsyncadd [#allocation3], 0
      %s17 = sshll.u32 %s0, 4
      %s18 = int_to_ptr.hbm [resolvable:$true] %s17
      %s19 = sshll.u32 [#allocation2], 4
      %s20 = int_to_ptr.vmem [resolvable:$true] %s19
      %25 = dma.hbm_to_vmem [thread:$0]  %s18, 128, %s20, [#allocation3], 64, 64, 4
    $region5: #{tpu_custom_call.1} parent=1 // pred_fallthru
      _
    // Predicated region
    $region6: #{tpu_custom_call.1} parent=1 // pred_check
      _
    $region7: #{tpu_custom_call.1} parent=1 // pred_check_branch
      %27 = sbr.rel (0) target = $region9
    $region8: #{tpu_custom_call.1} parent=1 // pred_region
      %29 = vsyncadd [#allocation6], 0
      %s30 = sshll.u32 %s1, 4
      %s31 = int_to_ptr.hbm [resolvable:$true] %s30
      %s32 = sshll.u32 [#allocation5], 4
      %s33 = int_to_ptr.vmem [resolvable:$true] %s32
      %38 = dma.hbm_to_vmem [thread:$0]  %s31, 256, %s33, [#allocation6], 64, 64, 4
    $region9: #{tpu_custom_call.1} parent=1 // pred_fallthru
      _
    // Predicated region
    $region10: #{tpu_custom_call.1} parent=1 // pred_check
      _
    $region11: #{tpu_custom_call.1} parent=1 // pred_check_branch
      %40 = sbr.rel (0) target = $region13
    $region12: #{tpu_custom_call.1} parent=1 // pred_region
      %42 = vsyncadd [#allocation6], 0
      %s43 = sshll.u32 %s2, 4
      %s44 = int_to_ptr.hbm [resolvable:$true] %s43
      %s45 = sshll.u32 [#allocation7], 4
      %s46 = int_to_ptr.vmem [resolvable:$true] %s45
      %51 = dma.hbm_to_vmem [thread:$0]  %s44, 256, %s46, [#allocation6], 64, 64, 4
    $region13: #{tpu_custom_call.1} parent=1 // pred_fallthru
      _
    // Predicated region
    $region14: #{tpu_custom_call.1} parent=1 // pred_check
      _
    $region15: #{tpu_custom_call.1} parent=1 // pred_check_branch
      %53 = sbr.rel (0) target = $region17
    $region16: #{tpu_custom_call.1} parent=1 // pred_region
      %55 = vsyncadd [#allocation9], 0
      %s57 = sshll.u32 %s3, 4
      %s58 = int_to_ptr.hbm [resolvable:$true] %s57
      %s59 = sshll.u32 [#allocation8], 4
      %s60 = int_to_ptr.vmem [resolvable:$true] %s59
      %62 = dma.hbm_to_vmem [thread:$0]  %s58, 128, %s60, [#allocation9]
    $region17: #{tpu_custom_call.1} parent=1 // pred_fallthru
      _
    // Predicated region
    $region18: #{tpu_custom_call.1} parent=1 // pred_check
      _
    $region19: #{tpu_custom_call.1} parent=1 // pred_check_branch
      %64 = sbr.rel (0) target = $region21
    $region20: #{tpu_custom_call.1} parent=1 // pred_region
      %66 = dma.done [#allocation3], 128
    $region21: #{tpu_custom_call.1} parent=1 // pred_fallthru
      _
    // Predicated region
    $region22: #{tpu_custom_call.1} parent=1 // pred_check
      _
    $region23: #{tpu_custom_call.1} parent=1 // pred_check_branch
      %68 = sbr.rel (0) target = $region25
    $region24: #{tpu_custom_call.1} parent=1 // pred_region
      %70 = dma.done [#allocation6], 256
    $region25: #{tpu_custom_call.1} parent=1 // pred_fallthru
      _
    // Predicated region
    $region26: #{tpu_custom_call.1} parent=1 // pred_check
      _
    $region27: #{tpu_custom_call.1} parent=1 // pred_check_branch
      %72 = sbr.rel (0) target = $region29
    $region28: #{tpu_custom_call.1} parent=1 // pred_region
      %74 = dma.done [#allocation6], 256
    $region29: #{tpu_custom_call.1} parent=1 // pred_fallthru
      _
    // Predicated region
    $region30: #{tpu_custom_call.1} parent=1 // pred_check
      _
    $region31: #{tpu_custom_call.1} parent=1 // pred_check_branch
      %76 = sbr.rel (0) target = $region33
    $region32: #{tpu_custom_call.1} parent=1 // pred_region
      %78 = dma.done [#allocation9], 128
    $region33: #{tpu_custom_call.1} parent=1 // pred_fallthru
      _
    %v80 = vld [vmem:[#allocation8] sm:$0xff]
    %v81 = vld [vmem:[#allocation2] sm:$0xf]
    %v82 = vld [vmem:[#allocation2 + $0x4] sm:$0xf]
    %v83 = vld [vmem:[#allocation5] sm:$0xf]
    %v84 = vld [vmem:[#allocation5 + $0x4] sm:$0xf]
    %v85 = vld [vmem:[#allocation5 + $0x8] sm:$0xf]
    %v86 = vld [vmem:[#allocation5 + $0xc] sm:$0xf]
    %v87 = vperm.slane %v80, 0
    %v90 = vunpack.c.l.b16 %v81
    %v91 = vunpack.c.l.b16 %v82
    %v92 = vpack.c.b16 %v91, %v90
    %v97 = vunpack.c.l.b16 %v83
    %v98 = vunpack.c.l.b16 %v84
    %v99 = vunpack.c.l.b16 %v85
    %v100 = vunpack.c.l.b16 %v86
    %v101 = vpack.c.b16 %v98, %v97
    %v102 = vpack.c.b16 %v100, %v99
    %vm105 = vcmask 261120
    %v107 = vsel %vm105, %v92, 0
    %109 = vmatpush.bf16.msra.mxu0 0
    %110 = vmatpush.bf16.msra.mxu0 0
    %111 = vmatpush.bf16.msra.mxu0 0
    %112 = vmatpush.bf16.msra.mxu0 0
    %113 = vmatpush.bf16.msra.mxu0 0
    %114 = vmatpush.bf16.msra.mxu0 0
    %115 = vmatpush.bf16.msra.mxu0 %v102
    %116 = vmatpush.bf16.msra.mxu0 %v101
    %117 = vmatmul.bf16.gmra.mxu0 %v107
    %v118 = vpop.f32.mrf.mxu0
    %v119 = vadd.f32 %v87, %v118
    %v120 = vpop.f32.mrf.mxu0
    %v121 = vadd.f32 %v87, %v120
    %122 = vdwg.mxu0
    %v123 = vsel %vm105, %v119, 0.0
    %124 = vadd.xlane.f32.xlu0 %v123
    %v125 = vpop.xlane.xlu0 %124
    %v126 = vsel %vm105, %v121, 0.0
    %127 = vadd.xlane.f32.xlu0 %v126
    %v128 = vpop.xlane.xlu0 %127
    %v129 = vmul.f32 %v125, 0.03125
    %v130 = vmul.f32 %v128, 0.03125
    %v131 = vsub.f32 %v119, %v129
    %v132 = vsub.f32 %v121, %v130
    %v133 = vmul.f32 %v131, %v131
    %v134 = vmul.f32 %v132, %v132
    %v135 = vsel %vm105, %v133, 0.0
    %136 = vadd.xlane.f32.xlu0 %v135
    %v137 = vpop.xlane.xlu0 %136
    %v138 = vsel %vm105, %v134, 0.0
    %139 = vadd.xlane.f32.xlu0 %v138
    %v140 = vpop.xlane.xlu0 %139
    %v141 = vmul.f32 %v137, 0.03125
    %v142 = vmul.f32 %v140, 0.03125
    %v143 = vadd.f32 %v141, 1e-05
    %v144 = vadd.f32 %v142, 1e-05
    %v145 = vrsqrt.pop %v143
    %v146 = vmul.f32 %v145, %v143
    %v147 = vmul.f32 %v146, %v145
    %v148 = vmul.f32 0.5, %v147
    %v149 = vsub.f32 1.5, %v148
    %v150 = vmul.f32 %v145, %v149
    %vm151 = vweird.f32 %v143
    %vm152 = vweird.f32 %v145
    %vm153 = vmor %vm151, %vm152
    %v154 = vsel %vm153, %v145, %v150
    %v155 = vrsqrt.pop %v144
    %v156 = vmul.f32 %v155, %v144
    %v157 = vmul.f32 %v156, %v155
    %v158 = vmul.f32 0.5, %v157
    %v159 = vsub.f32 1.5, %v158
    %v160 = vmul.f32 %v155, %v159
    %vm161 = vweird.f32 %v144
    %vm162 = vweird.f32 %v155
    %vm163 = vmor %vm161, %vm162
    %v164 = vsel %vm163, %v155, %v160
    %v165 = vmul.f32 %v131, %v154
    %v166 = vmul.f32 %v132, %v164
    %v167 = vperm.slane %v80, 1
    %v168 = vmul.f32 %v165, %v167
    %v169 = vmul.f32 %v166, %v167
    %v170 = vperm.slane %v80, 2
    %v171 = vadd.f32 %v168, %v170
    %v172 = vadd.f32 %v169, %v170
    %v173 = vmax.f32 %v171, 0.0
    %v174 = vmax.f32 %v172, 0.0
    %v175 = vpack.c.bf16 %v174, %v173
    %v176 = vld [vmem:[#allocation7] sm:$0xf]
    %v177 = vld [vmem:[#allocation7 + $0x4] sm:$0xf]
    %v178 = vld [vmem:[#allocation7 + $0x8] sm:$0xf]
    %v179 = vld [vmem:[#allocation7 + $0xc] sm:$0xf]
    %v180 = vperm.slane %v80, 3
    %v185 = vunpack.c.l.b16 %v176
    %v186 = vunpack.c.l.b16 %v177
    %v187 = vunpack.c.l.b16 %v178
    %v188 = vunpack.c.l.b16 %v179
    %v189 = vpack.c.b16 %v186, %v185
    %v190 = vpack.c.b16 %v188, %v187
    %v194 = vsel %vm105, %v175, 0
    %196 = vmatpush.bf16.msra.mxu0 0
    %197 = vmatpush.bf16.msra.mxu0 0
    %198 = vmatpush.bf16.msra.mxu0 0
    %199 = vmatpush.bf16.msra.mxu0 0
    %200 = vmatpush.bf16.msra.mxu0 0
    %201 = vmatpush.bf16.msra.mxu0 0
    %202 = vmatpush.bf16.msra.mxu0 %v190
    %203 = vmatpush.bf16.msra.mxu0 %v189
    %204 = vmatmul.bf16.gmra.mxu0 %v194
    %v205 = vpop.f32.mrf.mxu0
    %v206 = vadd.f32 %v180, %v205
    %v207 = vpop.f32.mrf.mxu0
    %v208 = vadd.f32 %v180, %v207
    %209 = vdwg.mxu0
    %v210 = vsel %vm105, %v206, 0.0
    %211 = vadd.xlane.f32.xlu0 %v210
    %v212 = vpop.xlane.xlu0 %211
    %v213 = vsel %vm105, %v208, 0.0
    %214 = vadd.xlane.f32.xlu0 %v213
    %v215 = vpop.xlane.xlu0 %214
    %v216 = vmul.f32 %v212, 0.03125
    %v217 = vmul.f32 %v215, 0.03125
    %v218 = vsub.f32 %v206, %v216
    %v219 = vsub.f32 %v208, %v217
    %v220 = vmul.f32 %v218, %v218
    %v221 = vmul.f32 %v219, %v219
    %v222 = vsel %vm105, %v220, 0.0
    %223 = vadd.xlane.f32.xlu0 %v222
    %v224 = vpop.xlane.xlu0 %223
    %v225 = vsel %vm105, %v221, 0.0
    %226 = vadd.xlane.f32.xlu0 %v225
    %v227 = vpop.xlane.xlu0 %226
    %v228 = vmul.f32 %v224, 0.03125
    %v229 = vmul.f32 %v227, 0.03125
    %v230 = vadd.f32 %v228, 1e-05
    %v231 = vadd.f32 %v229, 1e-05
    %v232 = vrsqrt.pop %v230
    %v233 = vmul.f32 %v232, %v230
    %v234 = vmul.f32 %v233, %v232
    %v235 = vmul.f32 0.5, %v234
    %v236 = vsub.f32 1.5, %v235
    %v237 = vmul.f32 %v232, %v236
    %vm238 = vweird.f32 %v230
    %vm239 = vweird.f32 %v232
    %vm240 = vmor %vm238, %vm239
    %v241 = vsel %vm240, %v232, %v237
    %v242 = vrsqrt.pop %v231
    %v243 = vmul.f32 %v242, %v231
    %v244 = vmul.f32 %v243, %v242
    %v245 = vmul.f32 0.5, %v244
    %v246 = vsub.f32 1.5, %v245
    %v247 = vmul.f32 %v242, %v246
    %vm248 = vweird.f32 %v231
    %vm249 = vweird.f32 %v242
    %vm250 = vmor %vm248, %vm249
    %v251 = vsel %vm250, %v242, %v247
    %v252 = vmul.f32 %v218, %v241
    %v253 = vmul.f32 %v219, %v251
    %v254 = vperm.slane %v80, 4
    %v255 = vmul.f32 %v252, %v254
    %v256 = vmul.f32 %v253, %v254
    %v257 = vperm.slane %v80, 5
    %v258 = vadd.f32 %v255, %v257
    %v259 = vadd.f32 %v256, %v257
    %v260 = vmax.f32 %v258, 0.0
    %v261 = vmax.f32 %v259, 0.0
    %v262 = vperm.slane %v80, 6
    %v263 = vmul.f32 %v260, %v262
    %v264 = vmul.f32 %v261, %v262
    %v265 = vsel %vm105, %v263, 0.0
    %266 = vadd.xlane.f32.xlu0 %v265
    %v267 = vpop.xlane.xlu0 %266
    %v268 = vsel %vm105, %v264, 0.0
    %269 = vadd.xlane.f32.xlu0 %v268
    %v270 = vpop.xlane.xlu0 %269
    %v271 = vperm.slane %v80, 7
    %v272 = vadd.f32 %v267, %v271
    %v273 = vadd.f32 %v270, %v271
    %274 = vxpose.xlu0.b32.start [1/16] %v272, 128
    %275 = vxpose.xlu0.b32.cont [2/16] %v273, 128
    %276 = vxpose.xlu0.b32.cont [3/16] 0.0, 128
    %277 = vxpose.xlu0.b32.cont [4/16] 0.0, 128
    %278 = vxpose.xlu0.b32.cont [5/16] 0.0, 128
    %279 = vxpose.xlu0.b32.cont [6/16] 0.0, 128
    %280 = vxpose.xlu0.b32.cont [7/16] 0.0, 128
    %281 = vxpose.xlu0.b32.cont [8/16] 0.0, 128
    %282 = vxpose.xlu0.b32.cont [9/16] 0.0, 128
    %283 = vxpose.xlu0.b32.cont [10/16] 0.0, 128
    %284 = vxpose.xlu0.b32.cont [11/16] 0.0, 128
    %285 = vxpose.xlu0.b32.cont [12/16] 0.0, 128
    %286 = vxpose.xlu0.b32.cont [13/16] 0.0, 128
    %287 = vxpose.xlu0.b32.cont [14/16] 0.0, 128
    %288 = vxpose.xlu0.b32.cont [15/16] 0.0, 128
    %289 = vxpose.xlu0.b32.end [16/16] 0.0, 128
    %v290 = vpop.trf.xlu0
    %v291 = vpop.trf.xlu0
    %v292 = vpop.trf.xlu0
    %v293 = vpop.trf.xlu0
    %v294 = vpop.trf.xlu0
    %v295 = vpop.trf.xlu0
    %v296 = vpop.trf.xlu0
    %v297 = vpop.trf.xlu0
    %v298 = vpop.trf.xlu0
    %v299 = vpop.trf.xlu0
    %v300 = vpop.trf.xlu0
    %v301 = vpop.trf.xlu0
    %v302 = vpop.trf.xlu0
    %v303 = vpop.trf.xlu0
    %v304 = vpop.trf.xlu0
    %v305 = vpop.trf.xlu0
    %vm306 = vcmask 122880
    %307 = vst.msk [vmem:[#allocation10] sm:$0x1] %vm306, %v290
    // Predicated region
    $region34: #{tpu_custom_call.1} parent=1 // pred_check
      _
    $region35: #{tpu_custom_call.1} parent=1 // pred_check_branch
      %309 = sbr.rel (0) target = $region37
    $region36: #{tpu_custom_call.1} parent=1 // pred_region
      %311 = vsyncadd [#allocation4], 0
      %s313 = sshll.u32 [#allocation10], 4
      %s314 = int_to_ptr.vmem [resolvable:$true] %s313
      %s315 = sshll.u32 %s4, 4
      %s316 = int_to_ptr.hbm [resolvable:$true] %s315
      %318 = dma.vmem_to_hbm [thread:$0]  %s314, 16, %s316, [#allocation4]
    $region37: #{tpu_custom_call.1} parent=1 // pred_fallthru
      _
    // Predicated region
    $region38: #{tpu_custom_call.1} parent=1 // pred_check
      _
    $region39: #{tpu_custom_call.1} parent=1 // pred_check_branch
      %320 = sbr.rel (0) target = $region41
    $region40: #{tpu_custom_call.1} parent=1 // pred_region
      %322 = dma.done [#allocation4], 16
    $region41: #{tpu_custom_call.1} parent=1 // pred_fallthru
      _
    %323 = vsyncpa [#allocation3], 1
    %324 = vsyncpa [#allocation6], 1
    %325 = vsyncpa [#allocation9], 1
    %326 = vsyncpa [#allocation4], 1

</llo_original>
